<compile_context>
chip_gen: v5e
topology: v5e:2x2
jax: 0.10.0
libtpu: 0.0.40
codegen_flags: <defaults>
</compile_context>

<pallas_src>
import functools
import math

import jax
import jax.numpy as jnp
from jax import lax
from jax.experimental import pallas as pl
from jax.experimental.pallas import tpu as pltpu

LN_EPS = 1e-5  # PyTorch nn.LayerNorm default


def _round_up(n, m):
    return ((n + m - 1) // m) * m


def _tanh_layernorm(h, b, g, be):
    """h: (d, cb) f32 pre-activation; b/g/be: (d, 1) f32.

    Tanh, then LayerNorm over the feature axis (axis 0 = sublanes), one-pass
    statistics (safe because tanh bounds |h| <= 1).
    """
    h = jnp.tanh(h + b)
    inv_d = 1.0 / h.shape[0]
    s1 = jnp.sum(h, axis=0, keepdims=True)            # (1, cb)
    s2 = jnp.sum(h * h, axis=0, keepdims=True)        # (1, cb)
    mu = s1 * inv_d
    var = jnp.maximum(s2 * inv_d - mu * mu, 0.0)       # guard tiny negative f32
    return (h - mu) * lax.rsqrt(var + LN_EPS) * g + be


def linear_block_kernel(x_ref, w1t_ref, w2t_ref, wot_ref, pv_ref, out_ref, *,
                        x_transposed, chunk_b):
    # x_ref : (tile_b, F) natural, or (F, tile_b) lane-dense (x_transposed)
    # w*t   : (d_out, d_in) bf16 transposed weights
    # pv_ref: (d_max, 7)  f32 packed vectors [b1,g1,be1,b2,g2,be2,bo]
    # out   : (out_f, tile_b) lane-dense logits block
    d1 = w1t_ref.shape[0]
    d2 = w2t_ref.shape[0]
    out_f = wot_ref.shape[0]
    tile_b = out_ref.shape[1]

    pv = pv_ref[...]
    b1, g1, be1 = pv[:d1, 0:1], pv[:d1, 1:2], pv[:d1, 2:3]
    b2, g2, be2 = pv[:d2, 3:4], pv[:d2, 4:5], pv[:d2, 5:6]
    bo = pv[:out_f, 6:7]

    w1t = w1t_ref[...]
    w2t = w2t_ref[...]
    wot = wot_ref[...]

    # Fully-unrolled (static offsets, 128-aligned) sub-chunk loop over the
    # batch/lane axis: bounds per-chunk vreg live ranges while the *DMA* block
    # stays large.  All slices below are static -> zero-cost ref views and
    # unmasked full-lane stores.
    for c0 in range(0, tile_b, chunk_b):
        cb = min(chunk_b, tile_b - c0)
        if x_transposed:
            xs = x_ref[:, c0:c0 + cb].astype(jnp.bfloat16)        # (F, cb)
            h = jnp.dot(w1t, xs, preferred_element_type=jnp.float32)
        else:
            xs = x_ref[c0:c0 + cb, :].astype(jnp.bfloat16)        # (cb, F)
            # Contract the feature dim of both operands -> (d1, cb); this does
            # the (batch, feat) -> (feat, batch) layout flip on the MXU.
            h = lax.dot_general(w1t, xs, (((1,), (1,)), ((), ())),
                                preferred_element_type=jnp.float32)
        h = _tanh_layernorm(h, b1, g1, be1)

        # Layer 2: (d2, d1) @ (d1, cb) -> (d2, cb)
        h = jnp.dot(w2t, h.astype(jnp.bfloat16),
                    preferred_element_type=jnp.float32)
        h = _tanh_layernorm(h, b2, g2, be2)

        # out_block Linear + final Tanh: (out_f, d2) @ (d2, cb) -> (out_f, cb)
        logits = jnp.tanh(
            jnp.dot(wot, h.astype(jnp.bfloat16),
                    preferred_element_type=jnp.float32) + bo)
        out_ref[:, c0:c0 + cb] = logits.astype(out_ref.dtype)


def pack_params(params):
    """PyTorch-layout params -> kernel layout.

    Weights -> transposed bf16 (d_out, d_in); all (1, d) vectors packed into a
    single f32 (d_max, 7) array so the kernel does one small DMA instead of 7.
    """
    (w1, b1, g1, be1), (w2, b2, g2, be2), (wo, bo) = params
    w1t = w1.T.astype(jnp.bfloat16)
    w2t = w2.T.astype(jnp.bfloat16)
    wot = wo.T.astype(jnp.bfloat16)
    vecs = [b1, g1, be1, b2, g2, be2, bo]            # each (1, d)
    d_max = max(v.shape[1] for v in vecs)
    pv = jnp.zeros((d_max, len(vecs)), jnp.float32)
    for j, v in enumerate(vecs):
        pv = pv.at[: v.shape[1], j].set(v[0].astype(jnp.float32))
    return w1t, w2t, wot, pv


def _select_tile_b(B, req):
    """Batch tile: multiple of 128, as large as possible up to `req`, with a
    best-effort EVEN grid (>= 2 steps, aiming for >= 8 when tiles can stay
    >= 512) so v7x's two TensorCores split the parallel axis evenly."""
    req = max(128, (int(req) // 128) * 128)
    if B <= 128:
        return 128                                   # single latency-bound step
    g0 = pl.cdiv(B, req)
    g = max(2, g0 + (g0 % 2))                        # even step count target
    cands = []
    while True:
        tile = _round_up(pl.cdiv(B, g), 128)
        if tile <= req:
            cands.append(tile)
            if g >= 8 or _round_up(pl.cdiv(B, g + 2), 128) < 512:
                break
        g += 2
    # Prefer the most-steps candidate whose *actual* grid is even.
    for tile in reversed(cands):
        if pl.cdiv(B, tile) % 2 == 0:
            return tile
    return cands[-1]


def linear_block_forward(x, params, *, tile_b=8192, chunk_b=512,
                         x_is_transposed=False, small_batch_fallback=0):
    """Fused LinearBlock forward. Returns (representations, logits).

    x: (B, F) float32 by default.  Pass x_is_transposed=True with x of shape
    (F, B) for a lane-dense feed (4x less x VMEM, no implicit MXU transpose).
    """
    if x_is_transposed:
        F, B = x.shape
    else:
        B, F = x.shape
    w1t, w2t, wot, pv = pack_params(params)
    out_f = wot.shape[0]

    # Tiny batches are latency-bound (single grid step, no pipelining): allow
    # routing them to plain XLA instead of paying the fixed Pallas call cost.
    if B <= small_batch_fallback:
        xin = x.T if x_is_transposed else x
        return x, reference_forward_mirror(xin, params)

    # Tile selection (see header).  Cap at 16K rows: the (B, F) x block is
    # lane-padded to 128 in VMEM -> 16K x 128 x 4B x 2 buffers = 16 MiB, safely
    # inside the 32 MiB scoped-VMEM default on v5e/v6e/v7x.
    tile_b = _select_tile_b(B, min(int(tile_b), 16384))
    grid = pl.cdiv(B, tile_b)
    chunk_b = max(128, (min(int(chunk_b), tile_b) // 128) * 128)

    if x_is_transposed:
        x_spec = pl.BlockSpec((F, tile_b), lambda i: (0, i))
    else:
        x_spec = pl.BlockSpec((tile_b, F), lambda i: (i, 0))

    kernel = functools.partial(linear_block_kernel,
                               x_transposed=x_is_transposed, chunk_b=chunk_b)

    # No wrapper-side jnp.pad: edge blocks cover B % tile_b != 0; padded
    # rows/lanes stay in their own batch columns and OOB outputs are dropped.
    out_t = pl.pallas_call(
        kernel,
        out_shape=jax.ShapeDtypeStruct((out_f, B), x.dtype),
        grid_spec=pltpu.PrefetchScalarGridSpec(
            num_scalar_prefetch=0,
            grid=(grid,),
            in_specs=[
                x_spec,
                pl.BlockSpec(w1t.shape, lambda i: (0, 0)),
                pl.BlockSpec(w2t.shape, lambda i: (0, 0)),
                pl.BlockSpec(wot.shape, lambda i: (0, 0)),
                pl.BlockSpec(pv.shape, lambda i: (0, 0)),
            ],
            out_specs=pl.BlockSpec((out_f, tile_b), lambda i: (0, i)),
        ),
        compiler_params=pltpu.CompilerParams(
            dimension_semantics=("parallel",),
        ),
    )(x, w1t, w2t, wot, pv)

    logits = out_t.T                                  # (B, out_f): layout only
    # ModelOutput(representations=x.representations, logits=logits)
    return x, logits


# ----------------------------- init & references -----------------------------

def xavier_uniform(key, fan_in, fan_out, gain):
    limit = gain * math.sqrt(6.0 / (fan_in + fan_out))
    return jax.random.uniform(
        key, (fan_in, fan_out), dtype=jnp.float32, minval=-limit, maxval=limit
    )


def init_params(key, in_features, out_features, num_layers):
    """Matches LinearBlock.__init__ + init_linear_block_weights:
    Linear weights: xavier_uniform(gain=calculate_gain('relu')=sqrt(2)), bias=0.
    LayerNorm: weight=1, bias=0.
    """
    gain = math.sqrt(2.0)
    params = []
    dims = [in_features // (2 ** i) for i in range(num_layers + 1)]
    keys = jax.random.split(key, num_layers + 1)
    for i in range(num_layers):
        d_in, d_out = dims[i], dims[i + 1]
        w = xavier_uniform(keys[i], d_in, d_out, gain)
        b = jnp.zeros((1, d_out), jnp.float32)
        g = jnp.ones((1, d_out), jnp.float32)    # LayerNorm weight
        be = jnp.zeros((1, d_out), jnp.float32)  # LayerNorm bias
        params.append((w, b, g, be))
    wo = xavier_uniform(keys[-1], dims[-1], out_features, gain)
    bo = jnp.zeros((1, out_features), jnp.float32)
    params.append((wo, bo))
    return tuple(params)


def reference_forward(x, params):
    """Module-faithful plain-JAX reference (f32 everywhere, two-pass LN)."""
    (w1, b1, g1, be1), (w2, b2, g2, be2), (wo, bo) = params

    def layer(h, w, b, g, be):
        h = jnp.tanh(h @ w + b)
        mu = jnp.mean(h, axis=-1, keepdims=True)
        var = jnp.mean(jnp.square(h - mu), axis=-1, keepdims=True)
        return (h - mu) / jnp.sqrt(var + LN_EPS) * g + be

    h = layer(x, w1, b1, g1, be1)
    h = layer(h, w2, b2, g2, be2)
    return jnp.tanh(h @ wo + bo)


def reference_forward_mirror(x, params):
    """Mirror of the kernel's numerics (bf16 matmul operands, one-pass LN)."""
    (w1, b1, g1, be1), (w2, b2, g2, be2), (wo, bo) = params

    def dot_bf16(a, b):
        return jnp.dot(a.astype(jnp.bfloat16), b.astype(jnp.bfloat16),
                       preferred_element_type=jnp.float32)

    def layer(h, w, b, g, be):
        h = jnp.tanh(dot_bf16(h, w) + b)
        d = h.shape[-1]
        mu = jnp.sum(h, -1, keepdims=True) / d
        var = jnp.maximum(jnp.sum(h * h, -1, keepdims=True) / d - mu * mu, 0.0)
        return (h - mu) * lax.rsqrt(var + LN_EPS) * g + be

    h = layer(x, w1, b1, g1, be1)
    h = layer(h, w2, b2, g2, be2)
    return jnp.tanh(dot_bf16(h, wo) + bo)


if __name__ == "__main__":
    in_features = 32
    out_features = 1
    num_layers = 2

    key = jax.random.PRNGKey(0)
    k_x, k_p = jax.random.split(key)
    params = init_params(k_p, in_features, out_features, num_layers)

    # batch=8   : tiny single-step block (128-row tile, garbage-row safety)
    # batch=272 : no wrapper pad; partial edge block; 2-step even grid
    # batch=1040: 640-row tile -> inner chunk loop (512 + 128) + edge block
    for batch in (8, 272, 1040):
        x = jax.random.normal(jax.random.fold_in(k_x, batch),
                              (batch, in_features), dtype=jnp.float32)
        representations, logits = linear_block_forward(x, params)
        logits = jax.block_until_ready(logits)

        assert logits.shape == (batch, out_features)
        assert jnp.array_equal(representations, x)

        # Exact-numerics mirror (bf16 matmuls + one-pass LN) -> tight tolerance.
        mirror = reference_forward_mirror(x, params)
        assert jnp.allclose(logits, mirror, atol=1e-4, rtol=1e-4)

        # Module-faithful f32 reference; tolerance accounts for bf16 matmul inputs.
        ref = reference_forward(x, params)
        assert jnp.allclose(logits, ref, atol=3e-2, rtol=0.0)

    # Lane-dense (F, B) input path: same math, 4x less x VMEM, plain MXU feed.
    x = jax.random.normal(jax.random.fold_in(k_x, 999),
                          (272, in_features), dtype=jnp.float32)
    _, logits_nat = linear_block_forward(x, params)
    _, logits_t = linear_block_forward(jnp.asarray(x.T), params,
                                       x_is_transposed=True)
    logits_t = jax.block_until_ready(logits_t)
    assert logits_t.shape == logits_nat.shape
    assert jnp.allclose(logits_nat, logits_t, atol=1e-5, rtol=1e-5)

    print("KERNEL_OK")
</pallas_src>

<mosaic_0001>
module attributes {stable_mosaic.version = 11 : i64} {
  func.func @linear_block_kernel(%arg0: i32, %arg1: memref<128x32xf32, #tpu.memory_space<vmem>>, %arg2: memref<16x32xbf16, #tpu.memory_space<vmem>>, %arg3: memref<8x16xbf16, #tpu.memory_space<vmem>>, %arg4: memref<1x8xbf16, #tpu.memory_space<vmem>>, %arg5: memref<16x7xf32, #tpu.memory_space<vmem>>, %arg6: memref<1x128xf32, #tpu.memory_space<vmem>>) attributes {dimension_semantics = [#tpu.dimension_semantics<parallel>], iteration_bounds = array<i64: 1>, scalar_prefetch = 0 : i64, scratch_operands = 0 : i64, tpu.core_type = #tpu.core_type<tc>, window_params = [{transform_indices = @transform_0, window_bounds = array<i64: 128, 32>}, {pipeline_mode = #tpu.pipeline_mode<synchronous>, transform_indices = @transform_1, window_bounds = array<i64: 16, 32>}, {pipeline_mode = #tpu.pipeline_mode<synchronous>, transform_indices = @transform_2, window_bounds = array<i64: 8, 16>}, {pipeline_mode = #tpu.pipeline_mode<synchronous>, transform_indices = @transform_3, window_bounds = array<i64: 1, 8>}, {pipeline_mode = #tpu.pipeline_mode<synchronous>, transform_indices = @transform_4, window_bounds = array<i64: 16, 7>}, {transform_indices = @transform_5, window_bounds = array<i64: 1, 128>}]} {
    %c0 = arith.constant 0 : index
    %c0_0 = arith.constant 0 : index
    %0 = vector.load %arg5[%c0, %c0_0] : memref<16x7xf32, #tpu.memory_space<vmem>>, vector<16x7xf32>
    %1 = vector.extract_strided_slice %0 {offsets = [0, 0], sizes = [16, 1], strides = [1, 1]} : vector<16x7xf32> to vector<16x1xf32>
    %2 = vector.extract_strided_slice %0 {offsets = [0, 1], sizes = [16, 1], strides = [1, 1]} : vector<16x7xf32> to vector<16x1xf32>
    %3 = vector.extract_strided_slice %0 {offsets = [0, 2], sizes = [16, 1], strides = [1, 1]} : vector<16x7xf32> to vector<16x1xf32>
    %4 = vector.extract_strided_slice %0 {offsets = [0, 3], sizes = [8, 1], strides = [1, 1]} : vector<16x7xf32> to vector<8x1xf32>
    %5 = vector.extract_strided_slice %0 {offsets = [0, 4], sizes = [8, 1], strides = [1, 1]} : vector<16x7xf32> to vector<8x1xf32>
    %6 = vector.extract_strided_slice %0 {offsets = [0, 5], sizes = [8, 1], strides = [1, 1]} : vector<16x7xf32> to vector<8x1xf32>
    %7 = vector.extract_strided_slice %0 {offsets = [0, 6], sizes = [1, 1], strides = [1, 1]} : vector<16x7xf32> to vector<1x1xf32>
    %c0_1 = arith.constant 0 : index
    %c0_2 = arith.constant 0 : index
    %8 = vector.load %arg2[%c0_1, %c0_2] : memref<16x32xbf16, #tpu.memory_space<vmem>>, vector<16x32xbf16>
    %c0_3 = arith.constant 0 : index
    %c0_4 = arith.constant 0 : index
    %9 = vector.load %arg3[%c0_3, %c0_4] : memref<8x16xbf16, #tpu.memory_space<vmem>>, vector<8x16xbf16>
    %c0_5 = arith.constant 0 : index
    %c0_6 = arith.constant 0 : index
    %10 = vector.load %arg4[%c0_5, %c0_6] : memref<1x8xbf16, #tpu.memory_space<vmem>>, vector<1x8xbf16>
    %c0_7 = arith.constant 0 : index
    %c0_8 = arith.constant 0 : index
    %11 = vector.load %arg1[%c0_7, %c0_8] : memref<128x32xf32, #tpu.memory_space<vmem>>, vector<128x32xf32>
    %12 = arith.truncf %11 : vector<128x32xf32> to vector<128x32xbf16>
    %cst = arith.constant dense<0.000000e+00> : vector<16x128xf32>
    %13 = tpu.matmul %8, %12, %cst {dimension_numbers = #tpu.dot_dimension_numbers<[1], [1], [0], [0], [0, 0, 1, 0], [], []>} : vector<16x32xbf16>, vector<128x32xbf16>, vector<16x128xf32> -> vector<16x128xf32>
    %14 = vector.broadcast %1 : vector<16x1xf32> to vector<16x128xf32>
    %15 = arith.addf %13, %14 : vector<16x128xf32>
    %16 = math.tanh %15 : vector<16x128xf32>
    %cst_9 = arith.constant dense<0.000000e+00> : vector<128xf32>
    %17 = vector.multi_reduction <add>, %16, %cst_9 [0] : vector<16x128xf32> to vector<128xf32>
    %18 = vector.shape_cast %17 : vector<128xf32> to vector<1x128xf32>
    %19 = arith.mulf %16, %16 : vector<16x128xf32>
    %cst_10 = arith.constant dense<0.000000e+00> : vector<128xf32>
    %20 = vector.multi_reduction <add>, %19, %cst_10 [0] : vector<16x128xf32> to vector<128xf32>
    %21 = vector.shape_cast %20 : vector<128xf32> to vector<1x128xf32>
    %cst_11 = arith.constant 6.250000e-02 : f32
    %22 = vector.broadcast %cst_11 : f32 to vector<1x128xf32>
    %23 = arith.mulf %18, %22 : vector<1x128xf32>
    %cst_12 = arith.constant 6.250000e-02 : f32
    %24 = vector.broadcast %cst_12 : f32 to vector<1x128xf32>
    %25 = arith.mulf %21, %24 : vector<1x128xf32>
    %26 = arith.mulf %23, %23 : vector<1x128xf32>
    %27 = arith.subf %25, %26 : vector<1x128xf32>
    %cst_13 = arith.constant 0.000000e+00 : f32
    %28 = vector.broadcast %cst_13 : f32 to vector<1x128xf32>
    %29 = arith.maximumf %27, %28 : vector<1x128xf32>
    %30 = vector.broadcast %23 : vector<1x128xf32> to vector<16x128xf32>
    %31 = arith.subf %16, %30 : vector<16x128xf32>
    %cst_14 = arith.constant 9.99999974E-6 : f32
    %32 = vector.broadcast %cst_14 : f32 to vector<1x128xf32>
    %33 = arith.addf %29, %32 : vector<1x128xf32>
    %34 = math.rsqrt %33 : vector<1x128xf32>
    %35 = vector.broadcast %34 : vector<1x128xf32> to vector<16x128xf32>
    %36 = arith.mulf %31, %35 : vector<16x128xf32>
    %37 = vector.broadcast %2 : vector<16x1xf32> to vector<16x128xf32>
    %38 = arith.mulf %36, %37 : vector<16x128xf32>
    %39 = vector.broadcast %3 : vector<16x1xf32> to vector<16x128xf32>
    %40 = arith.addf %38, %39 : vector<16x128xf32>
    %41 = arith.truncf %40 : vector<16x128xf32> to vector<16x128xbf16>
    %cst_15 = arith.constant dense<0.000000e+00> : vector<8x128xf32>
    %42 = tpu.matmul %9, %41, %cst_15 {dimension_numbers = #tpu.dot_dimension_numbers<[1], [0], [0], [1], [0, 0, 1, 1], [], []>} : vector<8x16xbf16>, vector<16x128xbf16>, vector<8x128xf32> -> vector<8x128xf32>
    %43 = vector.broadcast %4 : vector<8x1xf32> to vector<8x128xf32>
    %44 = arith.addf %42, %43 : vector<8x128xf32>
    %45 = math.tanh %44 : vector<8x128xf32>
    %cst_16 = arith.constant dense<0.000000e+00> : vector<128xf32>
    %46 = vector.multi_reduction <add>, %45, %cst_16 [0] : vector<8x128xf32> to vector<128xf32>
    %47 = vector.shape_cast %46 : vector<128xf32> to vector<1x128xf32>
    %48 = arith.mulf %45, %45 : vector<8x128xf32>
    %cst_17 = arith.constant dense<0.000000e+00> : vector<128xf32>
    %49 = vector.multi_reduction <add>, %48, %cst_17 [0] : vector<8x128xf32> to vector<128xf32>
    %50 = vector.shape_cast %49 : vector<128xf32> to vector<1x128xf32>
    %cst_18 = arith.constant 1.250000e-01 : f32
    %51 = vector.broadcast %cst_18 : f32 to vector<1x128xf32>
    %52 = arith.mulf %47, %51 : vector<1x128xf32>
    %cst_19 = arith.constant 1.250000e-01 : f32
    %53 = vector.broadcast %cst_19 : f32 to vector<1x128xf32>
    %54 = arith.mulf %50, %53 : vector<1x128xf32>
    %55 = arith.mulf %52, %52 : vector<1x128xf32>
    %56 = arith.subf %54, %55 : vector<1x128xf32>
    %cst_20 = arith.constant 0.000000e+00 : f32
    %57 = vector.broadcast %cst_20 : f32 to vector<1x128xf32>
    %58 = arith.maximumf %56, %57 : vector<1x128xf32>
    %59 = vector.broadcast %52 : vector<1x128xf32> to vector<8x128xf32>
    %60 = arith.subf %45, %59 : vector<8x128xf32>
    %cst_21 = arith.constant 9.99999974E-6 : f32
    %61 = vector.broadcast %cst_21 : f32 to vector<1x128xf32>
    %62 = arith.addf %58, %61 : vector<1x128xf32>
    %63 = math.rsqrt %62 : vector<1x128xf32>
    %64 = vector.broadcast %63 : vector<1x128xf32> to vector<8x128xf32>
    %65 = arith.mulf %60, %64 : vector<8x128xf32>
    %66 = vector.broadcast %5 : vector<8x1xf32> to vector<8x128xf32>
    %67 = arith.mulf %65, %66 : vector<8x128xf32>
    %68 = vector.broadcast %6 : vector<8x1xf32> to vector<8x128xf32>
    %69 = arith.addf %67, %68 : vector<8x128xf32>
    %70 = arith.truncf %69 : vector<8x128xf32> to vector<8x128xbf16>
    %cst_22 = arith.constant dense<0.000000e+00> : vector<1x128xf32>
    %71 = tpu.matmul %10, %70, %cst_22 {dimension_numbers = #tpu.dot_dimension_numbers<[1], [0], [0], [1], [0, 0, 1, 1], [], []>} : vector<1x8xbf16>, vector<8x128xbf16>, vector<1x128xf32> -> vector<1x128xf32>
    %72 = vector.broadcast %7 : vector<1x1xf32> to vector<1x128xf32>
    %73 = arith.addf %71, %72 : vector<1x128xf32>
    %74 = math.tanh %73 : vector<1x128xf32>
    %c0_23 = arith.constant 0 : index
    %c0_24 = arith.constant 0 : index
    %75 = vector.load %arg6[%c0_23, %c0_24] : memref<1x128xf32, #tpu.memory_space<vmem>>, vector<1x128xf32>
    tpu.vector_store %arg6[%c0_23, %c0_24], %74 {strides = array<i32>} : memref<1x128xf32, #tpu.memory_space<vmem>>, vector<1x128xf32>,
    return
  }
  func.func @transform_0(%arg0: i32) -> (i32, i32) {
    %c0_i32 = arith.constant 0 : i32
    %c0_i32_0 = arith.constant 0 : i32
    return %arg0, %c0_i32 : i32, i32
  }
  func.func @transform_1(%arg0: i32) -> (i32, i32) {
    %c0_i32 = arith.constant 0 : i32
    %c0_i32_0 = arith.constant 0 : i32
    %c0_i32_1 = arith.constant 0 : i32
    return %c0_i32, %c0_i32_0 : i32, i32
  }
  func.func @transform_2(%arg0: i32) -> (i32, i32) {
    %c0_i32 = arith.constant 0 : i32
    %c0_i32_0 = arith.constant 0 : i32
    %c0_i32_1 = arith.constant 0 : i32
    return %c0_i32, %c0_i32_0 : i32, i32
  }
  func.func @transform_3(%arg0: i32) -> (i32, i32) {
    %c0_i32 = arith.constant 0 : i32
    %c0_i32_0 = arith.constant 0 : i32
    %c0_i32_1 = arith.constant 0 : i32
    return %c0_i32, %c0_i32_0 : i32, i32
  }
  func.func @transform_4(%arg0: i32) -> (i32, i32) {
    %c0_i32 = arith.constant 0 : i32
    %c0_i32_0 = arith.constant 0 : i32
    %c0_i32_1 = arith.constant 0 : i32
    return %c0_i32, %c0_i32_0 : i32, i32
  }
  func.func @transform_5(%arg0: i32) -> (i32, i32) {
    %c0_i32 = arith.constant 0 : i32
    %c0_i32_0 = arith.constant 0 : i32
    return %c0_i32, %arg0 : i32, i32
  }
}

</mosaic_0001>

<llo_original>
// kernel: tpu_custom_call.1
$region0: #{tpu_custom_call.1}
  #allocation0 [shape = 'u32[]', space=smem, size = 0x4, offset = 0x4, fixed_abs, tag = 'smem constant byte address 0x4 - core index']
  #allocation1 [shape = 'u32[72,128]{1,0:T(1,128)}', space=vmem, size = 0x9000, scoped, tag = 'internal scratch']
  %s0 = inlined_call_operand.vmem [shape: f32[8,32], index: 0, kind: input, shape index: {}]
  %s1 = inlined_call_operand.vmem [shape: bf16[16,32], index: 1, kind: input, shape index: {}]
  %s2 = inlined_call_operand.vmem [shape: bf16[8,16], index: 2, kind: input, shape index: {}]
  %s3 = inlined_call_operand.vmem [shape: bf16[1,8], index: 3, kind: input, shape index: {}]
  %s4 = inlined_call_operand.vmem [shape: f32[16,7], index: 4, kind: input, shape index: {}]
  %s5 = inlined_call_operand.hbm [shape: f32[1,8], index: 5, kind: output, shape index: {}]
  %s6 = sld [smem:[#allocation0]]
  $region30: #{tpu_custom_call.1} parent=0
    _
  %s8 = ssub.s32 1, %s6
  %s9 = scalar_select 0, %s8, %s6
  $region1: #{tpu_custom_call.1} parent=0
    #allocation2 [shape = 'u8[512]{0}', space=vmem, size = 0x400, scoped, tag = 'output window, operand 0, single buffered']
    #allocation3 [shape = 's32[1]{0}', space=sflag, size = 0x4, scoped, tag = 'scoped memory for tpu_custom_call.1']
    %10 = vsyncpa [#allocation3], 0
    // Predicated region
    $region2: #{tpu_custom_call.1} parent=1 // pred_check
      _
    $region3: #{tpu_custom_call.1} parent=1 // pred_check_branch
      %12 = sbr.rel (0) target = $region5
    $region4: #{tpu_custom_call.1} parent=1 // pred_region
      _
    $region5: #{tpu_custom_call.1} parent=1 // pred_fallthru
      _
    // Predicated region
    $region6: #{tpu_custom_call.1} parent=1 // pred_check
      _
    $region7: #{tpu_custom_call.1} parent=1 // pred_check_branch
      %14 = sbr.rel (0) target = $region9
    $region8: #{tpu_custom_call.1} parent=1 // pred_region
      _
    $region9: #{tpu_custom_call.1} parent=1 // pred_fallthru
      _
    // Predicated region
    $region10: #{tpu_custom_call.1} parent=1 // pred_check
      _
    $region11: #{tpu_custom_call.1} parent=1 // pred_check_branch
      %16 = sbr.rel (0) target = $region13
    $region12: #{tpu_custom_call.1} parent=1 // pred_region
      _
    $region13: #{tpu_custom_call.1} parent=1 // pred_fallthru
      _
    // Predicated region
    $region14: #{tpu_custom_call.1} parent=1 // pred_check
      _
    $region15: #{tpu_custom_call.1} parent=1 // pred_check_branch
      %18 = sbr.rel (0) target = $region17
    $region16: #{tpu_custom_call.1} parent=1 // pred_region
      _
    $region17: #{tpu_custom_call.1} parent=1 // pred_fallthru
      _
    // Predicated region
    $region18: #{tpu_custom_call.1} parent=1 // pred_check
      _
    $region19: #{tpu_custom_call.1} parent=1 // pred_check_branch
      %20 = sbr.rel (0) target = $region21
    $region20: #{tpu_custom_call.1} parent=1 // pred_region
      _
    $region21: #{tpu_custom_call.1} parent=1 // pred_fallthru
      _
    %v22 = vld [vmem:[%s4] sm:$0xff]
    %v23 = vld [vmem:[%s4 + $0x8] sm:$0xff]
    %v24 = vld [vmem:[%s1] sm:$0xf]
    %v25 = vld [vmem:[%s1 + $0x4] sm:$0xf]
    %v26 = vld [vmem:[%s2] sm:$0xf]
    %v27 = vld [vmem:[%s3] sm:$0x1]
    %v28 = vld [vmem:[%s0] sm:$0xff]
    %v29 = vld [vmem:[%s0 + $0x8] sm:$0xff]
    %v30 = vld [vmem:[%s0 + $0x10] sm:$0xff]
    %v31 = vld [vmem:[%s0 + $0x18] sm:$0xff]
    %v32 = vld [vmem:[%s0 + $0x20] sm:$0xff]
    %v33 = vld [vmem:[%s0 + $0x28] sm:$0xff]
    %v34 = vld [vmem:[%s0 + $0x30] sm:$0xff]
    %v35 = vld [vmem:[%s0 + $0x38] sm:$0xff]
    %v36 = vld [vmem:[%s0 + $0x40] sm:$0xff]
    %v37 = vld [vmem:[%s0 + $0x48] sm:$0xff]
    %v38 = vld [vmem:[%s0 + $0x50] sm:$0xff]
    %v39 = vld [vmem:[%s0 + $0x58] sm:$0xff]
    %v40 = vld [vmem:[%s0 + $0x60] sm:$0xff]
    %v41 = vld [vmem:[%s0 + $0x68] sm:$0xff]
    %v42 = vld [vmem:[%s0 + $0x70] sm:$0xff]
    %v43 = vld [vmem:[%s0 + $0x78] sm:$0xff]
    %v44 = vpack.c.bf16 %v29, %v28
    %v45 = vpack.c.bf16 %v31, %v30
    %v46 = vpack.c.bf16 %v33, %v32
    %v47 = vpack.c.bf16 %v35, %v34
    %v48 = vpack.c.bf16 %v37, %v36
    %v49 = vpack.c.bf16 %v39, %v38
    %v50 = vpack.c.bf16 %v41, %v40
    %v51 = vpack.c.bf16 %v43, %v42
    %53 = vset.pattern.permute.xlu0 0
    %54 = vperm.xlu0 %53, %v22
    %v55 = vpop.permute.xlu0 %54
    %58 = vset.pattern.permute.xlu0 0
    %59 = vperm.xlu0 %58, %v23
    %v60 = vpop.permute.xlu0 %59
    %v64 = vunpack.c.l.b16 %v24
    %v65 = vunpack.c.l.b16 %v25
    %v66 = vpack.c.b16 %v65, %v64
    %vm67 = vcmask 261120
    %v69 = vsel %vm67, %v66, 0
    %v72 = vsel %vm67, %v44, 0
    %v75 = vsel %vm67, %v45, 0
    %v78 = vsel %vm67, %v46, 0
    %v81 = vsel %vm67, %v47, 0
    %v84 = vsel %vm67, %v48, 0
    %v87 = vsel %vm67, %v49, 0
    %v90 = vsel %vm67, %v50, 0
    %v93 = vsel %vm67, %v51, 0
    %95 = vmatpush.bf16.xpose.msra.mxu0 %v93
    %96 = vmatpush.bf16.xpose.msra.mxu0 %v90
    %97 = vmatpush.bf16.xpose.msra.mxu0 %v87
    %98 = vmatpush.bf16.xpose.msra.mxu0 %v84
    %99 = vmatpush.bf16.xpose.msra.mxu0 %v81
    %100 = vmatpush.bf16.xpose.msra.mxu0 %v78
    %101 = vmatpush.bf16.xpose.msra.mxu0 %v75
    %102 = vmatpush.bf16.xpose.msra.mxu0 %v72
    %103 = vmatmul.bf16.gmra.mxu0 %v69
    %v104 = vpop.f32.mrf.mxu0
    %v105 = vadd.f32 %v55, %v104
    %v106 = vpop.f32.mrf.mxu0
    %v107 = vadd.f32 %v60, %v106
    %108 = vdwg.mxu0
    %v109 = vtanh.pop %v105
    %v110 = vtanh.pop %v107
    %v111 = vadd.f32 %v109, %v110
    %v112 = vrot.slane %v111, 4
    %v113 = vadd.f32 %v111, %v112
    %v114 = vrot.slane %v113, 2
    %v115 = vadd.f32 %v113, %v114
    %v116 = vrot.slane %v115, 1
    %v117 = vadd.f32 %v115, %v116
    %v118 = vmul.f32 %v109, %v109
    %v119 = vmul.f32 %v110, %v110
    %v120 = vadd.f32 %v118, %v119
    %v121 = vrot.slane %v120, 4
    %v122 = vadd.f32 %v120, %v121
    %v123 = vrot.slane %v122, 2
    %v124 = vadd.f32 %v122, %v123
    %v125 = vrot.slane %v124, 1
    %v126 = vadd.f32 %v124, %v125
    %v127 = vmul.f32 %v117, 0.0625
    %v128 = vmul.f32 %v126, 0.0625
    %v129 = vmul.f32 %v127, %v127
    %v130 = vsub.f32 %v128, %v129
    %v131 = vmax.f32 %v130, 0.0
    %v132 = vsub.f32 %v109, %v127
    %v133 = vsub.f32 %v110, %v127
    %v134 = vadd.f32 %v131, 1e-05
    %v135 = vrsqrt.pop %v134
    %v136 = vmul.f32 %v135, %v134
    %v137 = vmul.f32 %v136, %v135
    %v138 = vmul.f32 0.5, %v137
    %v139 = vsub.f32 1.5, %v138
    %v140 = vmul.f32 %v135, %v139
    %vm141 = vweird.f32 %v134
    %vm142 = vweird.f32 %v135
    %vm143 = vmor %vm141, %vm142
    %v144 = vsel %vm143, %v135, %v140
    %v145 = vmul.f32 %v132, %v144
    %v146 = vmul.f32 %v133, %v144
    %147 = vset.pattern.permute.xlu0 1
    %148 = vperm.xlu0 %147, %v22
    %v149 = vpop.permute.xlu0 %148
    %151 = vset.pattern.permute.xlu0 1
    %152 = vperm.xlu0 %151, %v23
    %v153 = vpop.permute.xlu0 %152
    %v155 = vmul.f32 %v145, %v149
    %v156 = vmul.f32 %v146, %v153
    %157 = vset.pattern.permute.xlu0 2
    %158 = vperm.xlu0 %157, %v22
    %v159 = vpop.permute.xlu0 %158
    %161 = vset.pattern.permute.xlu0 2
    %162 = vperm.xlu0 %161, %v23
    %v163 = vpop.permute.xlu0 %162
    %v165 = vadd.f32 %v155, %v159
    %v166 = vadd.f32 %v156, %v163
    %v167 = vpack.c.bf16 %v166, %v165
    %168 = vset.pattern.permute.xlu0 3
    %169 = vperm.xlu0 %168, %v22
    %v170 = vpop.permute.xlu0 %169
    %vm172 = vcmask 130048
    %v174 = vsel %vm172, %v26, 0
    %176 = vmatpush.bf16.msra.mxu0 0
    %177 = vmatpush.bf16.msra.mxu0 0
    %178 = vmatpush.bf16.msra.mxu0 0
    %179 = vmatpush.bf16.msra.mxu0 0
    %180 = vmatpush.bf16.msra.mxu0 0
    %181 = vmatpush.bf16.msra.mxu0 0
    %182 = vmatpush.bf16.msra.mxu0 0
    %183 = vmatpush.bf16.msra.mxu0 %v167
    %184 = vmatmul.bf16.gmra.mxu0 %v174
    %v185 = vpop.f32.mrf.mxu0
    %v186 = vadd.f32 %v170, %v185
    %v187 = vpop.f32.mrf.mxu0
    %188 = vdwg.mxu0
    %v189 = vtanh.pop %v186
    %v190 = vrot.slane %v189, 4
    %v191 = vadd.f32 %v189, %v190
    %v192 = vrot.slane %v191, 2
    %v193 = vadd.f32 %v191, %v192
    %v194 = vrot.slane %v193, 1
    %v195 = vadd.f32 %v193, %v194
    %v196 = vmul.f32 %v189, %v189
    %v197 = vrot.slane %v196, 4
    %v198 = vadd.f32 %v196, %v197
    %v199 = vrot.slane %v198, 2
    %v200 = vadd.f32 %v198, %v199
    %v201 = vrot.slane %v200, 1
    %v202 = vadd.f32 %v200, %v201
    %v203 = vmul.f32 %v195, 0.125
    %v204 = vmul.f32 %v202, 0.125
    %v205 = vmul.f32 %v203, %v203
    %v206 = vsub.f32 %v204, %v205
    %v207 = vmax.f32 %v206, 0.0
    %v208 = vsub.f32 %v189, %v203
    %v209 = vadd.f32 %v207, 1e-05
    %v210 = vrsqrt.pop %v209
    %v211 = vmul.f32 %v210, %v209
    %v212 = vmul.f32 %v211, %v210
    %v213 = vmul.f32 0.5, %v212
    %v214 = vsub.f32 1.5, %v213
    %v215 = vmul.f32 %v210, %v214
    %vm216 = vweird.f32 %v209
    %vm217 = vweird.f32 %v210
    %vm218 = vmor %vm216, %vm217
    %v219 = vsel %vm218, %v210, %v215
    %v220 = vmul.f32 %v208, %v219
    %221 = vset.pattern.permute.xlu0 4
    %222 = vperm.xlu0 %221, %v22
    %v223 = vpop.permute.xlu0 %222
    %v225 = vmul.f32 %v220, %v223
    %226 = vset.pattern.permute.xlu0 5
    %227 = vperm.xlu0 %226, %v22
    %v228 = vpop.permute.xlu0 %227
    %v230 = vadd.f32 %v225, %v228
    %v231 = vpack.c.bf16 %v230, %v230
    %232 = vset.pattern.permute.xlu0 6
    %233 = vperm.xlu0 %232, %v22
    %v234 = vpop.permute.xlu0 %233
    %vm236 = vcmask 64512
    %v238 = vsel %vm236, %v27, 0
    %vm240 = vcmask 1043456
    %v242 = vsel %vm240, %v231, 0
    %244 = vmatpush.bf16.msra.mxu0 0
    %245 = vmatpush.bf16.msra.mxu0 0
    %246 = vmatpush.bf16.msra.mxu0 0
    %247 = vmatpush.bf16.msra.mxu0 0
    %248 = vmatpush.bf16.msra.mxu0 0
    %249 = vmatpush.bf16.msra.mxu0 0
    %250 = vmatpush.bf16.msra.mxu0 0
    %251 = vmatpush.bf16.msra.mxu0 %v242
    %252 = vmatmul.bf16.gmra.mxu0 %v238
    %v253 = vpop.f32.mrf.mxu0
    %v254 = vadd.f32 %v234, %v253
    %v255 = vpop.f32.mrf.mxu0
    %256 = vdwg.mxu0
    %v257 = vtanh.pop %v254
    %258 = vst [vmem:[#allocation2] sm:$0x1] %v257
    // Predicated region
    $region22: #{tpu_custom_call.1} parent=1 // pred_check
      _
    $region23: #{tpu_custom_call.1} parent=1 // pred_check_branch
      %260 = sbr.rel (0) target = $region25
    $region24: #{tpu_custom_call.1} parent=1 // pred_region
      %262 = vsyncadd [#allocation3], 0
      %s264 = sshll.u32 [#allocation2], 4
      %s265 = int_to_ptr.vmem [resolvable:$true] %s264
      %s266 = sshll.u32 %s5, 4
      %s267 = int_to_ptr.hbm [resolvable:$true] %s266
      %269 = dma.vmem_to_hbm [thread:$0]  %s265, 16, %s267, [#allocation3]
    $region25: #{tpu_custom_call.1} parent=1 // pred_fallthru
      _
    // Predicated region
    $region26: #{tpu_custom_call.1} parent=1 // pred_check
      _
    $region27: #{tpu_custom_call.1} parent=1 // pred_check_branch
      %271 = sbr.rel (0) target = $region29
    $region28: #{tpu_custom_call.1} parent=1 // pred_region
      %273 = dma.done [#allocation3], 16
    $region29: #{tpu_custom_call.1} parent=1 // pred_fallthru
      _
    %274 = vsyncpa [#allocation3], 1

</llo_original>
